<compile_context>
chip_gen: v7x
topology: tpu7x:2x2x1
jax: 0.10.0
libtpu: 0.0.40
codegen_flags: <defaults>
</compile_context>

<pallas_src>
import functools

import jax
import jax.numpy as jnp
from jax.experimental import pallas as pl
from jax.experimental.pallas import tpu as pltpu

_LANE = 128
_SMALL_HW = 256  # <= this: single full-HW block per batch tile


def make_divisible(value, divisor, min_value=None, min_ratio=0.9):
    """mmcv-style make_divisible (for the squeeze width)."""
    if min_value is None:
        min_value = divisor
    new_value = max(min_value, int(value + divisor / 2) // divisor * divisor)
    if new_value < min_ratio * value:
        new_value += divisor
    return new_value


def _gate(pooled, w1_ref, b1_ref, w2_ref, b2_ref, o_ref):
    """conv1(1x1)+ReLU then conv2(1x1)+HSigmoid(bias=3, div=6) on pooled (n, C)."""
    h = jnp.dot(pooled, w1_ref[...], preferred_element_type=jnp.float32) + b1_ref[...]
    h = jnp.maximum(h, 0.0)
    y = jnp.dot(h, w2_ref[...], preferred_element_type=jnp.float32) + b2_ref[...]
    o_ref[...] = jnp.clip((y + 3.0) * (1.0 / 6.0), 0.0, 1.0).astype(o_ref.dtype)


def _se_kernel_single(x_ref, w1_ref, b1_ref, w2_ref, b2_ref, o_ref, *, inv_hw):
    # Single HW block per batch tile (hw <= _SMALL_HW).  Block last dim == full
    # hw, so ragged spatial sizes need no masking and the f32 temp stays small.
    x = x_ref[...].astype(jnp.float32)                    # (n_tile, C, hw)
    pooled = jnp.sum(x, axis=-1) * inv_hw                 # (n_tile, C)
    _gate(pooled, w1_ref, b1_ref, w2_ref, b2_ref, o_ref)


def _se_kernel_tiled(x_ref, w1_ref, b1_ref, w2_ref, b2_ref, o_ref, acc_ref, *,
                     inv_hw, hw_tile, grid_hw, tail_valid):
    # Streamed HW tiles; acc_ref (n_tile, C, 128) f32 is resident across the
    # "arbitrary" HW axis.  tail_valid[c] is the static number of in-bounds
    # lanes of chunk c on the LAST HW step (x is NOT padded in HBM; the
    # out-of-bounds lanes of the boundary block are masked here, for free on
    # all other steps).
    j = pl.program_id(1)
    n_chunks = hw_tile // _LANE

    @pl.when(j == 0)
    def _init():
        acc_ref[...] = jnp.zeros_like(acc_ref)

    def accumulate(valid):
        partial = None
        for c in range(n_chunks):
            v = valid[c]
            if v == 0:
                continue                                   # fully OOB chunk: skip load
            chunk = x_ref[:, :, c * _LANE:(c + 1) * _LANE].astype(jnp.float32)
            if v < _LANE:
                lane = jax.lax.broadcasted_iota(jnp.int32, chunk.shape, 2)
                chunk = jnp.where(lane < v, chunk, 0.0)    # static mask, tail only
            partial = chunk if partial is None else partial + chunk
        if partial is not None:
            acc_ref[...] += partial

    full = (_LANE,) * n_chunks
    if tuple(tail_valid) == full:
        accumulate(full)                                   # hw % hw_tile == 0
    else:
        if grid_hw > 1:
            @pl.when(j < grid_hw - 1)
            def _body():
                accumulate(full)

        @pl.when(j == grid_hw - 1)
        def _tail():
            accumulate(tuple(tail_valid))

    @pl.when(j == grid_hw - 1)
    def _finalize():
        # one XLU cross-lane reduce; divide by the TRUE spatial size
        pooled = jnp.sum(acc_ref[...], axis=-1) * inv_hw
        _gate(pooled, w1_ref, b1_ref, w2_ref, b2_ref, o_ref)


def _vmem_capacity_bytes():
    try:
        info = pltpu.get_tpu_info()
        return int(getattr(info, "vmem_capacity_bytes", 128 << 20))
    except Exception:
        return 64 << 20          # conservative fallback (v7x per-core VMEM)


def se_layer(x_nchw, w1, b1, w2, b2, *, hw_tile_target=1024):
    """SE gate.  x: (N, C, H, W); w1: (mid, C); b1: (mid,); w2: (C, mid); b2: (C,).
    Returns the gate (N, C, 1, 1) in x's dtype (the module returns the gate only)."""
    N, C, H, W = x_nchw.shape
    mid = w1.shape[0]
    hw = H * W
    itemsize = jnp.dtype(x_nchw.dtype).itemsize

    # Keep x in its native dtype and do NOT pad: reshape only (no HBM copy).
    x3 = x_nchw.reshape(N, C, hw)

    # Weights as right-multiply matrices, biases as (1, k) rows (VMEM-resident
    # via constant index_maps below).
    w1_t = jnp.asarray(w1, jnp.float32).T          # (C, mid)
    w2_t = jnp.asarray(w2, jnp.float32).T          # (mid, C)
    b1_r = jnp.asarray(b1, jnp.float32)[None, :]   # (1, mid)
    b2_r = jnp.asarray(b2, jnp.float32)[None, :]   # (1, C)

    # ---- tile sizing from an explicit per-chip VMEM budget -------------------
    cap = _vmem_capacity_bytes()
    vmem_budget = min(cap // 2, 64 << 20)

    hw_tile_target = max(_LANE, (hw_tile_target // _LANE) * _LANE)
    single = hw <= _SMALL_HW
    tail_valid = ()
    if single:
        hw_tile, grid_hw = hw, 1
    else:
        hw_tile = min(hw_tile_target, (hw // _LANE) * _LANE)   # mult of 128, <= hw
        grid_hw = pl.cdiv(hw, hw_tile)

    # n_tile: multiple of 8 (or the full N); keep >= 2 "parallel" N steps when
    # N allows so both v7x TensorCores get work.
    if N <= 8:
        n_tile = N
    else:
        n_tile = max(8, min(64, ((N // 2) // 8) * 8))
    min_n_tile = N if N <= 8 else 8

    def vmem_bytes(nt, ht):
        in_b = 2 * nt * C * ht * itemsize                 # double-buffered input
        acc_b = 0 if single else nt * C * _LANE * 4       # resident accumulator
        w_b = 2 * 4 * (C * mid + mid + mid * C + C)       # weights/biases buffers
        out_b = 2 * nt * C * itemsize
        return in_b + acc_b + w_b + out_b

    # Prefer shrinking n_tile (keeps the lane dim long and DMA unmasked)...
    while vmem_bytes(n_tile, hw_tile) > vmem_budget and n_tile > min_n_tile:
        n_tile = max(min_n_tile, (n_tile // 16) * 8)
    # ...then hw_tile if still over budget.
    if not single:
        while vmem_bytes(n_tile, hw_tile) > vmem_budget and hw_tile > _LANE:
            hw_tile = max(_LANE, (hw_tile // 2 // _LANE) * _LANE)
        grid_hw = pl.cdiv(hw, hw_tile)
        last_start = (grid_hw - 1) * hw_tile
        tail_valid = tuple(
            int(min(max(hw - (last_start + c * _LANE), 0), _LANE))
            for c in range(hw_tile // _LANE))

    grid_n = pl.cdiv(N, n_tile)   # partial N tail is fine: per-row math, OOB rows dropped
    needed = vmem_bytes(n_tile, hw_tile)
    vmem_limit = int(min(cap * 7 // 8, max(needed + (8 << 20), 32 << 20)))

    cost = pl.CostEstimate(
        flops=2 * N * C * hw + 4 * N * C * mid,
        transcendentals=0,
        bytes_accessed=N * C * hw * itemsize + N * C * itemsize
        + 4 * (2 * C * mid + C + mid))

    if single:
        kernel = functools.partial(_se_kernel_single, inv_hw=1.0 / hw)
        grid = (grid_n,)
        in_specs = [
            pl.BlockSpec((n_tile, C, hw), lambda i: (i, 0, 0)),
            pl.BlockSpec((C, mid), lambda i: (0, 0)),
            pl.BlockSpec((1, mid), lambda i: (0, 0)),
            pl.BlockSpec((mid, C), lambda i: (0, 0)),
            pl.BlockSpec((1, C), lambda i: (0, 0)),
        ]
        out_specs = pl.BlockSpec((n_tile, C), lambda i: (i, 0))
        scratch_shapes = ()
        dims = ("parallel",)
    else:
        kernel = functools.partial(_se_kernel_tiled, inv_hw=1.0 / hw,
                                   hw_tile=hw_tile, grid_hw=grid_hw,
                                   tail_valid=tail_valid)
        grid = (grid_n, grid_hw)
        in_specs = [
            pl.BlockSpec((n_tile, C, hw_tile), lambda i, j: (i, 0, j)),
            pl.BlockSpec((C, mid), lambda i, j: (0, 0)),
            pl.BlockSpec((1, mid), lambda i, j: (0, 0)),
            pl.BlockSpec((mid, C), lambda i, j: (0, 0)),
            pl.BlockSpec((1, C), lambda i, j: (0, 0)),
        ]
        out_specs = pl.BlockSpec((n_tile, C), lambda i, j: (i, 0))
        scratch_shapes = (pltpu.VMEM((n_tile, C, _LANE), jnp.float32),)
        dims = ("parallel", "arbitrary")
    # TODO(synk): when N is too small for >=2 parallel N steps on v7x, the HW
    # reduction could additionally be split across the two TensorCores with a
    # tiny combine step.

    out = pl.pallas_call(
        kernel,
        out_shape=jax.ShapeDtypeStruct((N, C), x_nchw.dtype),
        grid_spec=pltpu.PrefetchScalarGridSpec(
            num_scalar_prefetch=0,
            grid=grid,
            in_specs=in_specs,
            out_specs=out_specs,
            scratch_shapes=scratch_shapes,
        ),
        compiler_params=pltpu.CompilerParams(
            dimension_semantics=dims,
            vmem_limit_bytes=vmem_limit),
        cost_estimate=cost,
    )(x3, w1_t, b1_r, w2_t, b2_r)

    # lane-dense (N, C) store inside the kernel; trivial reshape outside
    return out.reshape(N, C, 1, 1)


def se_layer_ref(x_nchw, w1, b1, w2, b2):
    """Plain-JAX reference matching the PyTorch forward."""
    pooled = jnp.mean(x_nchw.astype(jnp.float32), axis=(2, 3))   # (N, C)
    h = jnp.maximum(pooled @ w1.T + b1, 0.0)                     # (N, mid)
    y = h @ w2.T + b2                                            # (N, C)
    y = jnp.clip((y + 3.0) / 6.0, 0.0, 1.0)
    return y.reshape(*y.shape, 1, 1).astype(x_nchw.dtype)


def _run_case(key, N, C, H, W, ratio=16, **kwargs):
    mid = make_divisible(C // ratio, 8)
    k_x, k_w1, k_b1, k_w2, k_b2 = jax.random.split(key, 5)
    x = jax.random.normal(k_x, (N, C, H, W), dtype=jnp.float32)
    w1 = jax.random.normal(k_w1, (mid, C), dtype=jnp.float32) * 0.2
    b1 = jax.random.normal(k_b1, (mid,), dtype=jnp.float32) * 0.1
    w2 = jax.random.normal(k_w2, (C, mid), dtype=jnp.float32) * 0.2
    b2 = jax.random.normal(k_b2, (C,), dtype=jnp.float32) * 0.1

    out = se_layer(x, w1, b1, w2, b2, **kwargs)
    jax.block_until_ready(out)
    ref = se_layer_ref(x, w1, b1, w2, b2)
    assert out.shape == (N, C, 1, 1), out.shape
    err = float(jnp.max(jnp.abs(out - ref)))
    assert jnp.allclose(out, ref, atol=1e-5, rtol=1e-5), (N, C, H, W, err)


if __name__ == "__main__":
    key = jax.random.PRNGKey(0)
    k1, k2, k3, k4 = jax.random.split(key, 4)
    # single-HW-block path, 128-aligned spatial size (HW = 256)
    _run_case(k1, N=2, C=32, H=16, W=16, ratio=16)
    # single-HW-block path, ragged spatial size (HW = 49), sub-128 full-dim block
    _run_case(k2, N=2, C=16, H=7, W=7, ratio=16)
    # tiled-HW path with in-kernel masked ragged tail (HW = 400, hw_tile -> 256)
    _run_case(k3, N=4, C=16, H=20, W=20, ratio=16, hw_tile_target=256)
    # multi-step "parallel" N axis (N=16 -> n_tile=8, grid_n=2), ragged HW = 81
    _run_case(k4, N=16, C=32, H=9, W=9, ratio=16)
    print("KERNEL_OK")
</pallas_src>

<mosaic_0001>
module attributes {stable_mosaic.version = 11 : i64} {
  func.func @_se_kernel_single(%arg0: i32, %arg1: memref<2x32x256xf32, #tpu.memory_space<vmem>>, %arg2: memref<32x8xf32, #tpu.memory_space<vmem>>, %arg3: memref<1x8xf32, #tpu.memory_space<vmem>>, %arg4: memref<8x32xf32, #tpu.memory_space<vmem>>, %arg5: memref<1x32xf32, #tpu.memory_space<vmem>>, %arg6: memref<2x32xf32, #tpu.memory_space<vmem>>) attributes {dimension_semantics = [#tpu.dimension_semantics<parallel>], iteration_bounds = array<i64: 1>, scalar_prefetch = 0 : i64, scratch_operands = 0 : i64, tpu.core_type = #tpu.core_type<tc>, window_params = [{transform_indices = @transform_0, window_bounds = array<i64: 2, 32, 256>}, {pipeline_mode = #tpu.pipeline_mode<synchronous>, transform_indices = @transform_1, window_bounds = array<i64: 32, 8>}, {pipeline_mode = #tpu.pipeline_mode<synchronous>, transform_indices = @transform_2, window_bounds = array<i64: 1, 8>}, {pipeline_mode = #tpu.pipeline_mode<synchronous>, transform_indices = @transform_3, window_bounds = array<i64: 8, 32>}, {pipeline_mode = #tpu.pipeline_mode<synchronous>, transform_indices = @transform_4, window_bounds = array<i64: 1, 32>}, {transform_indices = @transform_5, window_bounds = array<i64: 2, 32>}]} {
    %c0 = arith.constant 0 : index
    %c0_0 = arith.constant 0 : index
    %c0_1 = arith.constant 0 : index
    %0 = vector.load %arg1[%c0, %c0_0, %c0_1] : memref<2x32x256xf32, #tpu.memory_space<vmem>>, vector<2x32x256xf32>
    %cst = arith.constant dense<0.000000e+00> : vector<2x32xf32>
    %1 = vector.multi_reduction <add>, %0, %cst [2] : vector<2x32x256xf32> to vector<2x32xf32>
    %cst_2 = arith.constant 3.906250e-03 : f32
    %2 = vector.broadcast %cst_2 : f32 to vector<2x32xf32>
    %3 = arith.mulf %1, %2 : vector<2x32xf32>
    %c0_3 = arith.constant 0 : index
    %c0_4 = arith.constant 0 : index
    %4 = vector.load %arg2[%c0_3, %c0_4] : memref<32x8xf32, #tpu.memory_space<vmem>>, vector<32x8xf32>
    %cst_5 = arith.constant dense<0.000000e+00> : vector<2x8xf32>
    %5 = tpu.matmul %3, %4, %cst_5 {dimension_numbers = #tpu.dot_dimension_numbers<[1], [0], [0], [1], [0, 0, 1, 1], [], []>} : vector<2x32xf32>, vector<32x8xf32>, vector<2x8xf32> -> vector<2x8xf32>
    %c0_6 = arith.constant 0 : index
    %c0_7 = arith.constant 0 : index
    %6 = vector.load %arg3[%c0_6, %c0_7] : memref<1x8xf32, #tpu.memory_space<vmem>>, vector<1x8xf32>
    %7 = vector.broadcast %6 : vector<1x8xf32> to vector<2x8xf32>
    %8 = arith.addf %5, %7 : vector<2x8xf32>
    %cst_8 = arith.constant 0.000000e+00 : f32
    %9 = vector.broadcast %cst_8 : f32 to vector<2x8xf32>
    %10 = arith.maximumf %8, %9 : vector<2x8xf32>
    %c0_9 = arith.constant 0 : index
    %c0_10 = arith.constant 0 : index
    %11 = vector.load %arg4[%c0_9, %c0_10] : memref<8x32xf32, #tpu.memory_space<vmem>>, vector<8x32xf32>
    %cst_11 = arith.constant dense<0.000000e+00> : vector<2x32xf32>
    %12 = tpu.matmul %10, %11, %cst_11 {dimension_numbers = #tpu.dot_dimension_numbers<[1], [0], [0], [1], [0, 0, 1, 1], [], []>} : vector<2x8xf32>, vector<8x32xf32>, vector<2x32xf32> -> vector<2x32xf32>
    %c0_12 = arith.constant 0 : index
    %c0_13 = arith.constant 0 : index
    %13 = vector.load %arg5[%c0_12, %c0_13] : memref<1x32xf32, #tpu.memory_space<vmem>>, vector<1x32xf32>
    %14 = vector.broadcast %13 : vector<1x32xf32> to vector<2x32xf32>
    %15 = arith.addf %12, %14 : vector<2x32xf32>
    %cst_14 = arith.constant 3.000000e+00 : f32
    %16 = vector.broadcast %cst_14 : f32 to vector<2x32xf32>
    %17 = arith.addf %15, %16 : vector<2x32xf32>
    %cst_15 = arith.constant 0.166666672 : f32
    %18 = vector.broadcast %cst_15 : f32 to vector<2x32xf32>
    %19 = arith.mulf %17, %18 : vector<2x32xf32>
    %cst_16 = arith.constant 0.000000e+00 : f32
    %cst_17 = arith.constant 1.000000e+00 : f32
    %20 = vector.broadcast %cst_16 : f32 to vector<2x32xf32>
    %21 = arith.maximumf %20, %19 : vector<2x32xf32>
    %22 = vector.broadcast %cst_17 : f32 to vector<2x32xf32>
    %23 = arith.minimumf %22, %21 : vector<2x32xf32>
    %c0_18 = arith.constant 0 : index
    %c0_19 = arith.constant 0 : index
    %24 = vector.load %arg6[%c0_18, %c0_19] : memref<2x32xf32, #tpu.memory_space<vmem>>, vector<2x32xf32>
    tpu.vector_store %arg6[%c0_18, %c0_19], %23 {strides = array<i32>} : memref<2x32xf32, #tpu.memory_space<vmem>>, vector<2x32xf32>,
    return
  }
  func.func @transform_0(%arg0: i32) -> (i32, i32, i32) {
    %c0_i32 = arith.constant 0 : i32
    %c0_i32_0 = arith.constant 0 : i32
    %c0_i32_1 = arith.constant 0 : i32
    return %arg0, %c0_i32, %c0_i32_0 : i32, i32, i32
  }
  func.func @transform_1(%arg0: i32) -> (i32, i32) {
    %c0_i32 = arith.constant 0 : i32
    %c0_i32_0 = arith.constant 0 : i32
    %c0_i32_1 = arith.constant 0 : i32
    return %c0_i32, %c0_i32_0 : i32, i32
  }
  func.func @transform_2(%arg0: i32) -> (i32, i32) {
    %c0_i32 = arith.constant 0 : i32
    %c0_i32_0 = arith.constant 0 : i32
    %c0_i32_1 = arith.constant 0 : i32
    return %c0_i32, %c0_i32_0 : i32, i32
  }
  func.func @transform_3(%arg0: i32) -> (i32, i32) {
    %c0_i32 = arith.constant 0 : i32
    %c0_i32_0 = arith.constant 0 : i32
    %c0_i32_1 = arith.constant 0 : i32
    return %c0_i32, %c0_i32_0 : i32, i32
  }
  func.func @transform_4(%arg0: i32) -> (i32, i32) {
    %c0_i32 = arith.constant 0 : i32
    %c0_i32_0 = arith.constant 0 : i32
    %c0_i32_1 = arith.constant 0 : i32
    return %c0_i32, %c0_i32_0 : i32, i32
  }
  func.func @transform_5(%arg0: i32) -> (i32, i32) {
    %c0_i32 = arith.constant 0 : i32
    %c0_i32_0 = arith.constant 0 : i32
    return %arg0, %c0_i32 : i32, i32
  }
}

</mosaic_0001>

<llo_original>
// kernel: tpu_custom_call.1
$region0: #{tpu_custom_call.1}
  #allocation0 [shape = 'u32[]', space=smem, size = 0x4, offset = 0x4, fixed_abs, tag = 'smem constant byte address 0x4 - core index']
  #allocation1 [shape = 'u32[144,128]{1,0:T(1,128)}', space=vmem, size = 0x12000, scoped, tag = 'internal scratch']
  %s0 = inlined_call_operand.hbm [shape: f32[2,32,256], index: 0, kind: input, shape index: {}]
  %s1 = inlined_call_operand.vmem [shape: f32[32,8], index: 1, kind: input, shape index: {}]
  %s2 = inlined_call_operand.vmem [shape: f32[1,8], index: 2, kind: input, shape index: {}]
  %s3 = inlined_call_operand.vmem [shape: f32[8,32], index: 3, kind: input, shape index: {}]
  %s4 = inlined_call_operand.vmem [shape: f32[1,32], index: 4, kind: input, shape index: {}]
  %s5 = inlined_call_operand.hbm [shape: f32[2,32], index: 5, kind: output, shape index: {}]
  %s6 = sld [smem:[#allocation0]]
  $region34: #{tpu_custom_call.1} parent=0
    _
  %s8 = ssub.s32 1, %s6
  %s9 = scalar_select 0, %s8, %s6
  $region1: #{tpu_custom_call.1} parent=0
    #allocation2 [shape = 'u8[65536]{0}', space=vmem, size = 0x10000, scoped, tag = 'input window, operand 0, single buffered']
    #allocation3 [shape = 's32[1]{0}', space=sflag, size = 0x4, scoped, tag = 'scoped memory for tpu_custom_call.1']
    #allocation4 [shape = 's32[1]{0}', space=sflag, size = 0x4, scoped, tag = 'scoped memory for tpu_custom_call.1']
    #allocation5 [shape = 'u8[1024]{0}', space=vmem, size = 0x400, scoped, tag = 'output window, operand 0, single buffered']
    %10 = vsyncpa [#allocation3], 0
    %11 = vsyncpa [#allocation4], 0
    // Predicated region
    $region2: #{tpu_custom_call.1} parent=1 // pred_check
      _
    $region3: #{tpu_custom_call.1} parent=1 // pred_check_branch
      %13 = sbr.rel (0) target = $region5
    $region4: #{tpu_custom_call.1} parent=1 // pred_region
      %s15 = ssub.s32 2048, 2048
      %16 = vsyncadd [#allocation3], %s15
      %s17 = sshll.u32 [#allocation2], 4
      %s18 = int_to_ptr.vmem [resolvable:$true] %s17
      %23 = dma.hbm_to_vmem [thread:$0]  %s0, 2048, %s18, [#allocation3], 256, 256, 16
    $region5: #{tpu_custom_call.1} parent=1 // pred_fallthru
      _
    // Predicated region
    $region6: #{tpu_custom_call.1} parent=1 // pred_check
      _
    $region7: #{tpu_custom_call.1} parent=1 // pred_check_branch
      %25 = sbr.rel (0) target = $region9
    $region8: #{tpu_custom_call.1} parent=1 // pred_region
      _
    $region9: #{tpu_custom_call.1} parent=1 // pred_fallthru
      _
    // Predicated region
    $region10: #{tpu_custom_call.1} parent=1 // pred_check
      _
    $region11: #{tpu_custom_call.1} parent=1 // pred_check_branch
      %27 = sbr.rel (0) target = $region13
    $region12: #{tpu_custom_call.1} parent=1 // pred_region
      _
    $region13: #{tpu_custom_call.1} parent=1 // pred_fallthru
      _
    // Predicated region
    $region14: #{tpu_custom_call.1} parent=1 // pred_check
      _
    $region15: #{tpu_custom_call.1} parent=1 // pred_check_branch
      %29 = sbr.rel (0) target = $region17
    $region16: #{tpu_custom_call.1} parent=1 // pred_region
      _
    $region17: #{tpu_custom_call.1} parent=1 // pred_fallthru
      _
    // Predicated region
    $region18: #{tpu_custom_call.1} parent=1 // pred_check
      _
    $region19: #{tpu_custom_call.1} parent=1 // pred_check_branch
      %31 = sbr.rel (0) target = $region21
    $region20: #{tpu_custom_call.1} parent=1 // pred_region
      _
    $region21: #{tpu_custom_call.1} parent=1 // pred_fallthru
      _
    // Predicated region
    $region22: #{tpu_custom_call.1} parent=1 // pred_check
      _
    $region23: #{tpu_custom_call.1} parent=1 // pred_check_branch
      %33 = sbr.rel (0) target = $region25
    $region24: #{tpu_custom_call.1} parent=1 // pred_region
      %34 = dma.done [#allocation3], 2048
    $region25: #{tpu_custom_call.1} parent=1 // pred_fallthru
      _
    %v35 = vld [vmem:[#allocation2] sm:$0xff]
    %v36 = vld [vmem:[#allocation2 + $0x8] sm:$0xff]
    %v37 = vld [vmem:[#allocation2 + $0x10] sm:$0xff]
    %v38 = vld [vmem:[#allocation2 + $0x18] sm:$0xff]
    %v39 = vld [vmem:[#allocation2 + $0x20] sm:$0xff]
    %v40 = vld [vmem:[#allocation2 + $0x28] sm:$0xff]
    %v41 = vld [vmem:[#allocation2 + $0x30] sm:$0xff]
    %v42 = vld [vmem:[#allocation2 + $0x38] sm:$0xff]
    %v43 = vld [vmem:[#allocation2 + $0x40] sm:$0xff]
    %v44 = vld [vmem:[#allocation2 + $0x48] sm:$0xff]
    %v45 = vld [vmem:[#allocation2 + $0x50] sm:$0xff]
    %v46 = vld [vmem:[#allocation2 + $0x58] sm:$0xff]
    %v47 = vld [vmem:[#allocation2 + $0x60] sm:$0xff]
    %v48 = vld [vmem:[#allocation2 + $0x68] sm:$0xff]
    %v49 = vld [vmem:[#allocation2 + $0x70] sm:$0xff]
    %v50 = vld [vmem:[#allocation2 + $0x78] sm:$0xff]
    %v51 = vadd.f32 %v35, %v36
    %52 = vadd.xlane.f32.xlu0 %v51
    %v53 = vpop.xlane.xlu0 %52
    %v54 = vadd.f32 %v37, %v38
    %55 = vadd.xlane.f32.xlu0 %v54
    %v56 = vpop.xlane.xlu0 %55
    %v57 = vadd.f32 %v39, %v40
    %58 = vadd.xlane.f32.xlu0 %v57
    %v59 = vpop.xlane.xlu0 %58
    %v60 = vadd.f32 %v41, %v42
    %61 = vadd.xlane.f32.xlu0 %v60
    %v62 = vpop.xlane.xlu0 %61
    %v63 = vadd.f32 %v43, %v44
    %64 = vadd.xlane.f32.xlu0 %v63
    %v65 = vpop.xlane.xlu0 %64
    %v66 = vadd.f32 %v45, %v46
    %67 = vadd.xlane.f32.xlu0 %v66
    %v68 = vpop.xlane.xlu0 %67
    %v69 = vadd.f32 %v47, %v48
    %70 = vadd.xlane.f32.xlu0 %v69
    %v71 = vpop.xlane.xlu0 %70
    %v72 = vadd.f32 %v49, %v50
    %73 = vadd.xlane.f32.xlu0 %v72
    %v74 = vpop.xlane.xlu0 %73
    %v75 = vmul.f32 %v53, 0.00390625
    %v76 = vmul.f32 %v56, 0.00390625
    %v77 = vmul.f32 %v59, 0.00390625
    %v78 = vmul.f32 %v62, 0.00390625
    %v79 = vmul.f32 %v65, 0.00390625
    %v80 = vmul.f32 %v68, 0.00390625
    %v81 = vmul.f32 %v71, 0.00390625
    %v82 = vmul.f32 %v74, 0.00390625
    %v83 = vld [vmem:[%s1] sm:$0xff]
    %v84 = vld [vmem:[%s1 + $0x8] sm:$0xff]
    %v85 = vld [vmem:[%s1 + $0x10] sm:$0xff]
    %v86 = vld [vmem:[%s1 + $0x18] sm:$0xff]
    %v87 = vld [vmem:[%s2] sm:$0x1]
    %v89 = vlaneseq
    %v90 = vshrl.u32 %v89, 7
    %v91 = vsub.s32 0, %v90
    %v92 = vrot.slane %v87, %v91
    %v102 = vlaneseq
    %v103 = vand.u32 %v102, 127
    %v104 = vlaneseq
    %v105 = vshrl.u32 %v104, 7
    %v106 = vsub.s32 %v103, %v105
    %v107 = vrot.slane %v75, %v106
    %v108 = vadd.s32 %v103, 4294967288
    %v109 = vlaneseq
    %v110 = vshrl.u32 %v109, 7
    %v111 = vsub.s32 %v108, %v110
    %v112 = vrot.slane %v76, %v111
    %vm113 = vcmask 130112
    %v114 = vsel %vm113, %v112, %v107
    %v115 = vadd.s32 %v103, 4294967280
    %v116 = vlaneseq
    %v117 = vshrl.u32 %v116, 7
    %v118 = vsub.s32 %v115, %v117
    %v119 = vrot.slane %v77, %v118
    %vm120 = vcmask 195712
    %v121 = vsel %vm120, %v119, %v114
    %v122 = vadd.s32 %v103, 4294967272
    %v123 = vlaneseq
    %v124 = vshrl.u32 %v123, 7
    %v125 = vsub.s32 %v122, %v124
    %v126 = vrot.slane %v78, %v125
    %vm127 = vcmask 261312
    %v128 = vsel %vm127, %v126, %v121
    %v129 = vlaneseq
    %v130 = vshrl.u32 %v129, 7
    %v131 = vsub.s32 %v103, %v130
    %v132 = vrot.slane %v79, %v131
    %v133 = vlaneseq
    %v134 = vshrl.u32 %v133, 7
    %v135 = vsub.s32 %v108, %v134
    %v136 = vrot.slane %v80, %v135
    %v137 = vsel %vm113, %v136, %v132
    %v138 = vlaneseq
    %v139 = vshrl.u32 %v138, 7
    %v140 = vsub.s32 %v115, %v139
    %v141 = vrot.slane %v81, %v140
    %v142 = vsel %vm120, %v141, %v137
    %v143 = vlaneseq
    %v144 = vshrl.u32 %v143, 7
    %v145 = vsub.s32 %v122, %v144
    %v146 = vrot.slane %v82, %v145
    %v147 = vsel %vm127, %v146, %v142
    %vm148 = vcmask 1041409
    %v149 = vsel %vm148, %v147, %v128
    %vm150 = vcmask 261120
    %v151 = vsel %vm150, %v149, 0
    %153 = vmatprep.subr.mxu0 0.0
    %154 = vmatpush1.msra.mxu0 %v83
    %155 = vmatprep.subr.mxu0 0.0
    %156 = vmatpush1.msra.mxu0 %v84
    %157 = vmatprep.subr.mxu0 0.0
    %158 = vmatpush1.msra.mxu0 %v85
    %159 = vmatprep.subr.mxu0 0.0
    %160 = vmatpush1.msra.mxu0 %v86
    %161 = vmatprep.subr.mxu0 0.0
    %162 = vmatpush1.msra.mxu0 0.0
    %163 = vmatprep.subr.mxu0 0.0
    %164 = vmatpush1.msra.mxu0 0.0
    %165 = vmatprep.subr.mxu0 0.0
    %166 = vmatpush1.msra.mxu0 0.0
    %167 = vmatprep.subr.mxu0 0.0
    %168 = vmatpush1.msra.mxu0 0.0
    %169 = vmatprep.subr.mxu0 0.0
    %170 = vmatpush1.msra.mxu0 0.0
    %171 = vmatprep.subr.mxu0 0.0
    %172 = vmatpush1.msra.mxu0 0.0
    %173 = vmatprep.subr.mxu0 0.0
    %174 = vmatpush1.msra.mxu0 0.0
    %175 = vmatprep.subr.mxu0 0.0
    %176 = vmatpush1.msra.mxu0 0.0
    %177 = vmatprep.subr.mxu0 0.0
    %178 = vmatpush1.msra.mxu0 0.0
    %179 = vmatprep.subr.mxu0 0.0
    %180 = vmatpush1.msra.mxu0 0.0
    %181 = vmatprep.subr.mxu0 0.0
    %182 = vmatpush1.msra.mxu0 0.0
    %183 = vmatprep.subr.mxu0 0.0
    %184 = vmatpush1.msra.mxu0 0.0
    %185 = vmatprep.subr.mxu0 0.0
    %186 = vmatpush1.msra.mxu0 0.0
    %187 = vmatprep.subr.mxu0 0.0
    %188 = vmatpush1.msra.mxu0 0.0
    %189 = vmatprep.subr.mxu0 0.0
    %190 = vmatpush1.msra.mxu0 0.0
    %191 = vmatprep.subr.mxu0 0.0
    %192 = vmatpush1.msra.mxu0 0.0
    %193 = vmatprep.subr.mxu0 0.0
    %194 = vmatpush1.msra.mxu0 0.0
    %195 = vmatprep.subr.mxu0 0.0
    %196 = vmatpush1.msra.mxu0 0.0
    %197 = vmatprep.subr.mxu0 0.0
    %198 = vmatpush1.msra.mxu0 0.0
    %199 = vmatprep.subr.mxu0 0.0
    %200 = vmatpush1.msra.mxu0 0.0
    %201 = vmatprep.subr.mxu0 0.0
    %202 = vmatpush1.msra.mxu0 0.0
    %203 = vmatprep.subr.mxu0 0.0
    %204 = vmatpush1.msra.mxu0 0.0
    %205 = vmatprep.subr.mxu0 0.0
    %206 = vmatpush1.msra.mxu0 0.0
    %207 = vmatprep.subr.mxu0 0.0
    %208 = vmatpush1.msra.mxu0 0.0
    %209 = vmatprep.subr.mxu0 0.0
    %210 = vmatpush1.msra.mxu0 0.0
    %211 = vmatprep.subr.mxu0 0.0
    %212 = vmatpush1.msra.mxu0 0.0
    %213 = vmatprep.subr.mxu0 0.0
    %214 = vmatpush1.msra.mxu0 0.0
    %215 = vmatprep.subr.mxu0 0.0
    %216 = vmatpush1.msra.mxu0 0.0
    %217 = vmatprep.mubr.f32.mxu0 0.0
    %218 = vmatmul.mubr.f32.gmra.mrb[0].mxu0 %v151
    %v219 = vpop.f32.mrb[0].mxu0
    %v220 = vadd.f32 %v92, %v219
    %v221 = vpop.f32.mrb[0].mxu0
    %222 = vdwg.mxu0
    %v223 = vmax.f32 %v220, 0.0
    %v224 = vld [vmem:[%s3] sm:$0xff]
    %v225 = vld [vmem:[%s4] sm:$0x1]
    %v227 = vlaneseq
    %v228 = vshrl.u32 %v227, 7
    %v229 = vsub.s32 0, %v228
    %v230 = vrot.slane %v225, %v229
    %vm232 = vcmask 64512
    %v234 = vsel %vm232, %v223, 0
    %236 = vmatprep.subr.mxu0 0.0
    %237 = vmatpush1.msra.mxu0 %v224
    %238 = vmatprep.subr.mxu0 0.0
    %239 = vmatpush1.msra.mxu0 0.0
    %240 = vmatprep.subr.mxu0 0.0
    %241 = vmatpush1.msra.mxu0 0.0
    %242 = vmatprep.subr.mxu0 0.0
    %243 = vmatpush1.msra.mxu0 0.0
    %244 = vmatprep.subr.mxu0 0.0
    %245 = vmatpush1.msra.mxu0 0.0
    %246 = vmatprep.subr.mxu0 0.0
    %247 = vmatpush1.msra.mxu0 0.0
    %248 = vmatprep.subr.mxu0 0.0
    %249 = vmatpush1.msra.mxu0 0.0
    %250 = vmatprep.subr.mxu0 0.0
    %251 = vmatpush1.msra.mxu0 0.0
    %252 = vmatprep.subr.mxu0 0.0
    %253 = vmatpush1.msra.mxu0 0.0
    %254 = vmatprep.subr.mxu0 0.0
    %255 = vmatpush1.msra.mxu0 0.0
    %256 = vmatprep.subr.mxu0 0.0
    %257 = vmatpush1.msra.mxu0 0.0
    %258 = vmatprep.subr.mxu0 0.0
    %259 = vmatpush1.msra.mxu0 0.0
    %260 = vmatprep.subr.mxu0 0.0
    %261 = vmatpush1.msra.mxu0 0.0
    %262 = vmatprep.subr.mxu0 0.0
    %263 = vmatpush1.msra.mxu0 0.0
    %264 = vmatprep.subr.mxu0 0.0
    %265 = vmatpush1.msra.mxu0 0.0
    %266 = vmatprep.subr.mxu0 0.0
    %267 = vmatpush1.msra.mxu0 0.0
    %268 = vmatprep.subr.mxu0 0.0
    %269 = vmatpush1.msra.mxu0 0.0
    %270 = vmatprep.subr.mxu0 0.0
    %271 = vmatpush1.msra.mxu0 0.0
    %272 = vmatprep.subr.mxu0 0.0
    %273 = vmatpush1.msra.mxu0 0.0
    %274 = vmatprep.subr.mxu0 0.0
    %275 = vmatpush1.msra.mxu0 0.0
    %276 = vmatprep.subr.mxu0 0.0
    %277 = vmatpush1.msra.mxu0 0.0
    %278 = vmatprep.subr.mxu0 0.0
    %279 = vmatpush1.msra.mxu0 0.0
    %280 = vmatprep.subr.mxu0 0.0
    %281 = vmatpush1.msra.mxu0 0.0
    %282 = vmatprep.subr.mxu0 0.0
    %283 = vmatpush1.msra.mxu0 0.0
    %284 = vmatprep.subr.mxu0 0.0
    %285 = vmatpush1.msra.mxu0 0.0
    %286 = vmatprep.subr.mxu0 0.0
    %287 = vmatpush1.msra.mxu0 0.0
    %288 = vmatprep.subr.mxu0 0.0
    %289 = vmatpush1.msra.mxu0 0.0
    %290 = vmatprep.subr.mxu0 0.0
    %291 = vmatpush1.msra.mxu0 0.0
    %292 = vmatprep.subr.mxu0 0.0
    %293 = vmatpush1.msra.mxu0 0.0
    %294 = vmatprep.subr.mxu0 0.0
    %295 = vmatpush1.msra.mxu0 0.0
    %296 = vmatprep.subr.mxu0 0.0
    %297 = vmatpush1.msra.mxu0 0.0
    %298 = vmatprep.subr.mxu0 0.0
    %299 = vmatpush1.msra.mxu0 0.0
    %300 = vmatprep.mubr.f32.mxu0 0.0
    %301 = vmatmul.mubr.f32.gmra.mrb[0].mxu0 %v234
    %v302 = vpop.f32.mrb[0].mxu0
    %v303 = vadd.f32 %v230, %v302
    %v304 = vpop.f32.mrb[0].mxu0
    %305 = vdwg.mxu0
    %v306 = vadd.f32 %v303, 3.0
    %v307 = vmul.f32 %v306, 0.16666667
    %v308 = vmax.f32 %v307, 0.0
    %v309 = vmin.f32 %v308, 1.0
    %vm310 = vcmask 254976
    %311 = vst.msk [vmem:[#allocation5] sm:$0x3] %vm310, %v309
    // Predicated region
    $region26: #{tpu_custom_call.1} parent=1 // pred_check
      _
    $region27: #{tpu_custom_call.1} parent=1 // pred_check_branch
      %313 = sbr.rel (0) target = $region29
    $region28: #{tpu_custom_call.1} parent=1 // pred_region
      %s315 = ssub.s32 32, 32
      %316 = vsyncadd [#allocation4], %s315
      %s318 = sshll.u32 [#allocation5], 4
      %s319 = int_to_ptr.vmem [resolvable:$true] %s318
      %321 = dma.vmem_to_hbm [thread:$0]  %s319, 32, %s5, [#allocation4]
    $region29: #{tpu_custom_call.1} parent=1 // pred_fallthru
      _
    // Predicated region
    $region30: #{tpu_custom_call.1} parent=1 // pred_check
      _
    $region31: #{tpu_custom_call.1} parent=1 // pred_check_branch
      %323 = sbr.rel (0) target = $region33
    $region32: #{tpu_custom_call.1} parent=1 // pred_region
      %324 = dma.done [#allocation4], 32
    $region33: #{tpu_custom_call.1} parent=1 // pred_fallthru
      _
    %325 = vsyncpa [#allocation3], 1
    %326 = vsyncpa [#allocation4], 1

</llo_original>
